<compile_context>
chip_gen: v7x
topology: tpu7x:2x2x1
jax: 0.10.0
libtpu: 0.0.40
codegen_flags: <defaults>
</compile_context>

<pallas_src>
import functools

import jax
import jax.numpy as jnp
from jax.experimental import pallas as pl
from jax.experimental.pallas import tpu as pltpu

INIT_A = -0.1
INIT_B = 0.1
DROP_P = 0.5


def _mlp_kernel(x_ref, w1_ref, b1_ref, w2_ref, b2_ref, *rest, apply_dropout: bool):
    if apply_dropout:
        mask_ref, o_ref = rest
    else:
        (o_ref,) = rest

    # Layer 1: x @ W1 + b1 -> ReLU.  bf16 MXU inputs, f32 accumulation.
    h = jnp.dot(x_ref[...].astype(jnp.bfloat16), w1_ref[...],
                preferred_element_type=jnp.float32)
    h = jnp.maximum(h + b1_ref[...], 0.0)            # (tb, H1) + (1, H1) broadcast

    # Layer 2: h @ W2 + b2 -> ReLU.
    y = jnp.dot(h.astype(jnp.bfloat16), w2_ref[...],
                preferred_element_type=jnp.float32)
    y = jnp.maximum(y + b2_ref[...], 0.0)            # (tb, H2) + (1, H2) broadcast

    if apply_dropout:
        # Mask is pre-scaled to {0, 1/(1-p)} -> dropout is a single vmul on the VPU.
        y = y * mask_ref[...]

    o_ref[...] = y.astype(o_ref.dtype)


def _round_up(x, m):
    return (x + m - 1) // m * m


def _pick_block_b(B, D_in, H1, H2, budget_bytes=20 << 20):
    """Batch tile: multiple of 8 (f32 sublane), capped by a VMEM budget so the
    double-buffered x/mask/out tiles + the h intermediate fit comfortably even
    on v7x's 64 MiB VMEM, and capped at 1024 rows (diminishing returns past that)."""
    bytes_per_row = 4 * (2 * D_in + 2 * H2 + 2 * H2 + 2 * H1)
    blk = budget_bytes // max(bytes_per_row, 1)
    blk = int(min(blk, 1024, _round_up(B, 8)))
    blk = max(8, (blk // 8) * 8)
    return blk


def mlp_forward(x, w1, b1, w2, b2, *, key=None, training=True, block_b=None):
    """Pallas MLP forward.

    x  : (B, D_in)  float32
    w1 : (D_in, H1) float32   (transposed vs. torch's (H1, D_in))
    b1 : (H1,)      float32
    w2 : (H1, H2)   float32
    b2 : (H2,)      float32
    key: jax PRNG key for the dropout mask (training mode only)
    """
    B, D_in = x.shape
    H1 = w1.shape[1]
    H2 = w2.shape[1]

    if block_b is None:
        block_b = _pick_block_b(B, D_in, H1, H2)
    assert block_b % 8 == 0

    # Pad the batch to a multiple of the tile; slice the result back afterwards.
    B_pad = _round_up(B, block_b)
    if B_pad != B:
        x = jnp.pad(x, ((0, B_pad - B), (0, 0)))
    grid = (B_pad // block_b,)

    # Cast weights to bf16 once in the wrapper (halves weight DMA, full-rate MXU).
    # Biases stay f32 and are added to the f32 accumulator.
    w1_bf = w1.astype(jnp.bfloat16)
    w2_bf = w2.astype(jnp.bfloat16)
    b1_2d = b1.reshape(1, H1).astype(jnp.float32)
    b2_2d = b2.reshape(1, H2).astype(jnp.float32)

    in_specs = [
        pl.BlockSpec((block_b, D_in), lambda i: (i, 0)),
        pl.BlockSpec((D_in, H1), lambda i: (0, 0)),
        pl.BlockSpec((1, H1), lambda i: (0, 0)),
        pl.BlockSpec((H1, H2), lambda i: (0, 0)),
        pl.BlockSpec((1, H2), lambda i: (0, 0)),
    ]
    args = [x, w1_bf, b1_2d, w2_bf, b2_2d]

    if training:
        if key is None:
            key = jax.random.PRNGKey(0)
        keep = jax.random.bernoulli(key, 1.0 - DROP_P, (B_pad, H2))
        mask = keep.astype(jnp.float32) * (1.0 / (1.0 - DROP_P))
        in_specs.append(pl.BlockSpec((block_b, H2), lambda i: (i, 0)))
        args.append(mask)

    kernel = functools.partial(_mlp_kernel, apply_dropout=training)

    out = pl.pallas_call(
        kernel,
        out_shape=jax.ShapeDtypeStruct((B_pad, H2), x.dtype),
        grid_spec=pltpu.PrefetchScalarGridSpec(
            num_scalar_prefetch=0,
            grid=grid,
            in_specs=in_specs,
            out_specs=pl.BlockSpec((block_b, H2), lambda i: (i, 0)),
        ),
        compiler_params=pltpu.CompilerParams(
            # Batch blocks are fully independent -> parallel lets v7x's 2 TCs
            # split the grid; neutral on v5e/v6e.
            dimension_semantics=("parallel",),
            # Above the 16/32 MiB scoped defaults so large tiles double-buffer,
            # still well under v7x's 64 MiB physical VMEM.
            vmem_limit_bytes=48 * 1024 * 1024,
        ),
    )(*args)

    return out[:B]


def init_mlp_params(key, input_size, layer_size=(256, 128)):
    """uniform_(p, a=-0.1, b=0.1) for every parameter, like the torch module."""
    h1, h2 = layer_size
    k1, k2, k3, k4 = jax.random.split(key, 4)
    # torch Linear stores weight as (out, in); we keep the transposed (in, out) layout.
    w1 = jax.random.uniform(k1, (input_size, h1), jnp.float32, INIT_A, INIT_B)
    b1 = jax.random.uniform(k2, (h1,), jnp.float32, INIT_A, INIT_B)
    w2 = jax.random.uniform(k3, (h1, h2), jnp.float32, INIT_A, INIT_B)
    b2 = jax.random.uniform(k4, (h2,), jnp.float32, INIT_A, INIT_B)
    return w1, b1, w2, b2


if __name__ == "__main__":
    key = jax.random.PRNGKey(0)
    k_params, k_x, k_drop = jax.random.split(key, 3)

    B = 16
    input_size = 32
    layer_size = (256, 128)

    w1, b1, w2, b2 = init_mlp_params(k_params, input_size, layer_size)
    x = jax.random.normal(k_x, (B, input_size), dtype=jnp.float32)

    # Training-mode forward (Dropout active), like a freshly constructed torch module.
    out_train = jax.block_until_ready(
        mlp_forward(x, w1, b1, w2, b2, key=k_drop, training=True))
    assert out_train.shape == (B, layer_size[1]) and out_train.dtype == jnp.float32

    # Eval-mode output against a pure-JAX reference (same bf16-input matmul precision).
    out_eval = jax.block_until_ready(
        mlp_forward(x, w1, b1, w2, b2, training=False))
    h_ref = jnp.maximum(
        jnp.dot(x.astype(jnp.bfloat16), w1.astype(jnp.bfloat16),
                preferred_element_type=jnp.float32) + b1, 0.0)
    ref = jnp.maximum(
        jnp.dot(h_ref.astype(jnp.bfloat16), w2.astype(jnp.bfloat16),
                preferred_element_type=jnp.float32) + b2, 0.0)
    assert jnp.allclose(out_eval, ref, atol=1e-2, rtol=1e-2)

    # Training output must be either dropped (0) or the eval value scaled by 1/(1-p)=2.
    ok = jnp.isclose(out_train, 0.0, atol=1e-6) | jnp.isclose(
        out_train, 2.0 * ref, atol=1e-2, rtol=1e-2)
    assert bool(jnp.all(ok))

    print("KERNEL_OK")
</pallas_src>

<mosaic_0001>
module attributes {stable_mosaic.version = 11 : i64} {
  func.func @_mlp_kernel(%arg0: i32, %arg1: memref<16x32xf32, #tpu.memory_space<vmem>>, %arg2: memref<32x256xbf16, #tpu.memory_space<vmem>>, %arg3: memref<1x256xf32, #tpu.memory_space<vmem>>, %arg4: memref<256x128xbf16, #tpu.memory_space<vmem>>, %arg5: memref<1x128xf32, #tpu.memory_space<vmem>>, %arg6: memref<16x128xf32, #tpu.memory_space<vmem>>, %arg7: memref<16x128xf32, #tpu.memory_space<vmem>>) attributes {dimension_semantics = [#tpu.dimension_semantics<parallel>], iteration_bounds = array<i64: 1>, scalar_prefetch = 0 : i64, scratch_operands = 0 : i64, tpu.core_type = #tpu.core_type<tc>, window_params = [{transform_indices = @transform_0, window_bounds = array<i64: 16, 32>}, {pipeline_mode = #tpu.pipeline_mode<synchronous>, transform_indices = @transform_1, window_bounds = array<i64: 32, 256>}, {pipeline_mode = #tpu.pipeline_mode<synchronous>, transform_indices = @transform_2, window_bounds = array<i64: 1, 256>}, {pipeline_mode = #tpu.pipeline_mode<synchronous>, transform_indices = @transform_3, window_bounds = array<i64: 256, 128>}, {pipeline_mode = #tpu.pipeline_mode<synchronous>, transform_indices = @transform_4, window_bounds = array<i64: 1, 128>}, {transform_indices = @transform_5, window_bounds = array<i64: 16, 128>}, {transform_indices = @transform_6, window_bounds = array<i64: 16, 128>}]} {
    %c0 = arith.constant 0 : index
    %c0_0 = arith.constant 0 : index
    %0 = vector.load %arg1[%c0, %c0_0] : memref<16x32xf32, #tpu.memory_space<vmem>>, vector<16x32xf32>
    %1 = arith.truncf %0 : vector<16x32xf32> to vector<16x32xbf16>
    %c0_1 = arith.constant 0 : index
    %c0_2 = arith.constant 0 : index
    %2 = vector.load %arg2[%c0_1, %c0_2] : memref<32x256xbf16, #tpu.memory_space<vmem>>, vector<32x256xbf16>
    %cst = arith.constant dense<0.000000e+00> : vector<16x256xf32>
    %3 = tpu.matmul %1, %2, %cst {dimension_numbers = #tpu.dot_dimension_numbers<[1], [0], [0], [1], [0, 0, 1, 1], [], []>} : vector<16x32xbf16>, vector<32x256xbf16>, vector<16x256xf32> -> vector<16x256xf32>
    %c0_3 = arith.constant 0 : index
    %c0_4 = arith.constant 0 : index
    %4 = vector.load %arg3[%c0_3, %c0_4] : memref<1x256xf32, #tpu.memory_space<vmem>>, vector<1x256xf32>
    %5 = vector.broadcast %4 : vector<1x256xf32> to vector<16x256xf32>
    %6 = arith.addf %3, %5 : vector<16x256xf32>
    %cst_5 = arith.constant 0.000000e+00 : f32
    %7 = vector.broadcast %cst_5 : f32 to vector<16x256xf32>
    %8 = arith.maximumf %6, %7 : vector<16x256xf32>
    %9 = arith.truncf %8 : vector<16x256xf32> to vector<16x256xbf16>
    %c0_6 = arith.constant 0 : index
    %c0_7 = arith.constant 0 : index
    %10 = vector.load %arg4[%c0_6, %c0_7] : memref<256x128xbf16, #tpu.memory_space<vmem>>, vector<256x128xbf16>
    %cst_8 = arith.constant dense<0.000000e+00> : vector<16x128xf32>
    %11 = tpu.matmul %9, %10, %cst_8 {dimension_numbers = #tpu.dot_dimension_numbers<[1], [0], [0], [1], [0, 0, 1, 1], [], []>} : vector<16x256xbf16>, vector<256x128xbf16>, vector<16x128xf32> -> vector<16x128xf32>
    %c0_9 = arith.constant 0 : index
    %c0_10 = arith.constant 0 : index
    %12 = vector.load %arg5[%c0_9, %c0_10] : memref<1x128xf32, #tpu.memory_space<vmem>>, vector<1x128xf32>
    %13 = vector.broadcast %12 : vector<1x128xf32> to vector<16x128xf32>
    %14 = arith.addf %11, %13 : vector<16x128xf32>
    %cst_11 = arith.constant 0.000000e+00 : f32
    %15 = vector.broadcast %cst_11 : f32 to vector<16x128xf32>
    %16 = arith.maximumf %14, %15 : vector<16x128xf32>
    %c0_12 = arith.constant 0 : index
    %c0_13 = arith.constant 0 : index
    %17 = vector.load %arg6[%c0_12, %c0_13] : memref<16x128xf32, #tpu.memory_space<vmem>>, vector<16x128xf32>
    %18 = arith.mulf %16, %17 : vector<16x128xf32>
    %c0_14 = arith.constant 0 : index
    %c0_15 = arith.constant 0 : index
    %19 = vector.load %arg7[%c0_14, %c0_15] : memref<16x128xf32, #tpu.memory_space<vmem>>, vector<16x128xf32>
    tpu.vector_store %arg7[%c0_14, %c0_15], %18 {strides = array<i32>} : memref<16x128xf32, #tpu.memory_space<vmem>>, vector<16x128xf32>,
    return
  }
  func.func @transform_0(%arg0: i32) -> (i32, i32) {
    %c0_i32 = arith.constant 0 : i32
    %c0_i32_0 = arith.constant 0 : i32
    return %arg0, %c0_i32 : i32, i32
  }
  func.func @transform_1(%arg0: i32) -> (i32, i32) {
    %c0_i32 = arith.constant 0 : i32
    %c0_i32_0 = arith.constant 0 : i32
    %c0_i32_1 = arith.constant 0 : i32
    return %c0_i32, %c0_i32_0 : i32, i32
  }
  func.func @transform_2(%arg0: i32) -> (i32, i32) {
    %c0_i32 = arith.constant 0 : i32
    %c0_i32_0 = arith.constant 0 : i32
    %c0_i32_1 = arith.constant 0 : i32
    return %c0_i32, %c0_i32_0 : i32, i32
  }
  func.func @transform_3(%arg0: i32) -> (i32, i32) {
    %c0_i32 = arith.constant 0 : i32
    %c0_i32_0 = arith.constant 0 : i32
    %c0_i32_1 = arith.constant 0 : i32
    return %c0_i32, %c0_i32_0 : i32, i32
  }
  func.func @transform_4(%arg0: i32) -> (i32, i32) {
    %c0_i32 = arith.constant 0 : i32
    %c0_i32_0 = arith.constant 0 : i32
    %c0_i32_1 = arith.constant 0 : i32
    return %c0_i32, %c0_i32_0 : i32, i32
  }
  func.func @transform_5(%arg0: i32) -> (i32, i32) {
    %c0_i32 = arith.constant 0 : i32
    %c0_i32_0 = arith.constant 0 : i32
    return %arg0, %c0_i32 : i32, i32
  }
  func.func @transform_6(%arg0: i32) -> (i32, i32) {
    %c0_i32 = arith.constant 0 : i32
    %c0_i32_0 = arith.constant 0 : i32
    return %arg0, %c0_i32 : i32, i32
  }
}

</mosaic_0001>

<llo_original>
// kernel: tpu_custom_call.1
$region0: #{tpu_custom_call.1}
  #allocation0 [shape = 'u32[]', space=smem, size = 0x4, offset = 0x4, fixed_abs, tag = 'smem constant byte address 0x4 - core index']
  #allocation1 [shape = 'u32[144,128]{1,0:T(1,128)}', space=vmem, size = 0x12000, scoped, tag = 'internal scratch']
  %s0 = inlined_call_operand.hbm [shape: f32[16,32], index: 0, kind: input, shape index: {}]
  %s1 = inlined_call_operand.hbm [shape: bf16[32,256], index: 1, kind: input, shape index: {}]
  %s2 = inlined_call_operand.vmem [shape: f32[1,256], index: 2, kind: input, shape index: {}]
  %s3 = inlined_call_operand.hbm [shape: bf16[256,128], index: 3, kind: input, shape index: {}]
  %s4 = inlined_call_operand.hbm [shape: f32[1,128], index: 4, kind: input, shape index: {}]
  %s5 = inlined_call_operand.vmem [shape: f32[16,128], index: 5, kind: input, shape index: {}]
  %s6 = inlined_call_operand.hbm [shape: f32[16,128], index: 6, kind: output, shape index: {}]
  %s7 = sld [smem:[#allocation0]]
  $region50: #{tpu_custom_call.1} parent=0
    _
  %s9 = ssub.s32 1, %s7
  %s10 = scalar_select 0, %s9, %s7
  $region1: #{tpu_custom_call.1} parent=0
    #allocation2 [shape = 'u8[8192]{0}', space=vmem, size = 0x2000, scoped, tag = 'input window, operand 0, single buffered']
    #allocation3 [shape = 's32[1]{0}', space=sflag, size = 0x4, scoped, tag = 'scoped memory for tpu_custom_call.1']
    #allocation4 [shape = 's32[1]{0}', space=sflag, size = 0x4, scoped, tag = 'scoped memory for tpu_custom_call.1']
    #allocation5 [shape = 'u8[16384]{0}', space=vmem, size = 0x4000, scoped, tag = 'input window, operand 1, single buffered']
    #allocation6 [shape = 's32[1]{0}', space=sflag, size = 0x4, scoped, tag = 'scoped memory for tpu_custom_call.1']
    #allocation7 [shape = 'u8[65536]{0}', space=vmem, size = 0x10000, scoped, tag = 'input window, operand 3, single buffered']
    #allocation8 [shape = 'u8[512]{0}', space=vmem, size = 0x400, scoped, tag = 'input window, operand 4, single buffered']
    #allocation9 [shape = 's32[1]{0}', space=sflag, size = 0x4, scoped, tag = 'scoped memory for tpu_custom_call.1']
    #allocation10 [shape = 'u8[8192]{0}', space=vmem, size = 0x2000, scoped, tag = 'output window, operand 0, single buffered']
    %11 = vsyncpa [#allocation3], 0
    %12 = vsyncpa [#allocation6], 0
    %13 = vsyncpa [#allocation9], 0
    %14 = vsyncpa [#allocation4], 0
    // Predicated region
    $region2: #{tpu_custom_call.1} parent=1 // pred_check
      _
    $region3: #{tpu_custom_call.1} parent=1 // pred_check_branch
      %16 = sbr.rel (0) target = $region5
    $region4: #{tpu_custom_call.1} parent=1 // pred_region
      %s18 = ssub.s32 256, 256
      %19 = vsyncadd [#allocation3], %s18
      %s20 = sshll.u32 [#allocation2], 4
      %s21 = int_to_ptr.vmem [resolvable:$true] %s20
      %26 = dma.hbm_to_vmem [thread:$0]  %s0, 256, %s21, [#allocation3], 128, 128, 8
    $region5: #{tpu_custom_call.1} parent=1 // pred_fallthru
      _
    // Predicated region
    $region6: #{tpu_custom_call.1} parent=1 // pred_check
      _
    $region7: #{tpu_custom_call.1} parent=1 // pred_check_branch
      %28 = sbr.rel (0) target = $region9
    $region8: #{tpu_custom_call.1} parent=1 // pred_region
      %s30 = ssub.s32 512, 512
      %31 = vsyncadd [#allocation6], %s30
      %s32 = sshll.u32 [#allocation5], 4
      %s33 = int_to_ptr.vmem [resolvable:$true] %s32
      %38 = dma.hbm_to_vmem [thread:$0]  %s1, 512, %s33, [#allocation6], 128, 128, 8
    $region9: #{tpu_custom_call.1} parent=1 // pred_fallthru
      _
    // Predicated region
    $region10: #{tpu_custom_call.1} parent=1 // pred_check
      _
    $region11: #{tpu_custom_call.1} parent=1 // pred_check_branch
      %40 = sbr.rel (0) target = $region13
    $region12: #{tpu_custom_call.1} parent=1 // pred_region
      _
    $region13: #{tpu_custom_call.1} parent=1 // pred_fallthru
      _
    // Predicated region
    $region14: #{tpu_custom_call.1} parent=1 // pred_check
      _
    $region15: #{tpu_custom_call.1} parent=1 // pred_check_branch
      %42 = sbr.rel (0) target = $region17
    $region16: #{tpu_custom_call.1} parent=1 // pred_region
      %s44 = ssub.s32 2048, 2048
      %45 = vsyncadd [#allocation6], %s44
      %s46 = sshll.u32 [#allocation7], 4
      %s47 = int_to_ptr.vmem [resolvable:$true] %s46
      %52 = dma.hbm_to_vmem [thread:$0]  %s3, 2048, %s47, [#allocation6], 64, 64, 4
    $region17: #{tpu_custom_call.1} parent=1 // pred_fallthru
      _
    // Predicated region
    $region18: #{tpu_custom_call.1} parent=1 // pred_check
      _
    $region19: #{tpu_custom_call.1} parent=1 // pred_check_branch
      %54 = sbr.rel (0) target = $region21
    $region20: #{tpu_custom_call.1} parent=1 // pred_region
      %s56 = ssub.s32 16, 16
      %57 = vsyncadd [#allocation9], %s56
      %s59 = sshll.u32 [#allocation8], 4
      %s60 = int_to_ptr.vmem [resolvable:$true] %s59
      %62 = dma.hbm_to_vmem [thread:$0]  %s4, 16, %s60, [#allocation9]
    $region21: #{tpu_custom_call.1} parent=1 // pred_fallthru
      _
    // Predicated region
    $region22: #{tpu_custom_call.1} parent=1 // pred_check
      _
    $region23: #{tpu_custom_call.1} parent=1 // pred_check_branch
      %64 = sbr.rel (0) target = $region25
    $region24: #{tpu_custom_call.1} parent=1 // pred_region
      _
    $region25: #{tpu_custom_call.1} parent=1 // pred_fallthru
      _
    // Predicated region
    $region26: #{tpu_custom_call.1} parent=1 // pred_check
      _
    $region27: #{tpu_custom_call.1} parent=1 // pred_check_branch
      %66 = sbr.rel (0) target = $region29
    $region28: #{tpu_custom_call.1} parent=1 // pred_region
      %67 = dma.done [#allocation3], 256
    $region29: #{tpu_custom_call.1} parent=1 // pred_fallthru
      _
    // Predicated region
    $region30: #{tpu_custom_call.1} parent=1 // pred_check
      _
    $region31: #{tpu_custom_call.1} parent=1 // pred_check_branch
      %69 = sbr.rel (0) target = $region33
    $region32: #{tpu_custom_call.1} parent=1 // pred_region
      %70 = dma.done [#allocation6], 512
    $region33: #{tpu_custom_call.1} parent=1 // pred_fallthru
      _
    // Predicated region
    $region34: #{tpu_custom_call.1} parent=1 // pred_check
      _
    $region35: #{tpu_custom_call.1} parent=1 // pred_check_branch
      %72 = sbr.rel (0) target = $region37
    $region36: #{tpu_custom_call.1} parent=1 // pred_region
      %73 = dma.done [#allocation6], 2048
    $region37: #{tpu_custom_call.1} parent=1 // pred_fallthru
      _
    // Predicated region
    $region38: #{tpu_custom_call.1} parent=1 // pred_check
      _
    $region39: #{tpu_custom_call.1} parent=1 // pred_check_branch
      %75 = sbr.rel (0) target = $region41
    $region40: #{tpu_custom_call.1} parent=1 // pred_region
      %76 = dma.done [#allocation9], 16
    $region41: #{tpu_custom_call.1} parent=1 // pred_fallthru
      _
    %v78 = vld [vmem:[#allocation2] sm:$0xff]
    %v79 = vld [vmem:[#allocation2 + $0x8] sm:$0xff]
    %v80 = vpack.c.bf16 %v79, %v78
    %v81 = vld [vmem:[#allocation5] sm:$0xff]
    %v82 = vld [vmem:[#allocation5 + $0x8] sm:$0xff]
    %v83 = vld [vmem:[#allocation5 + $0x10] sm:$0xff]
    %v84 = vld [vmem:[#allocation5 + $0x18] sm:$0xff]
    %v85 = vld [vmem:[%s2] sm:$0x3]
    %v87 = vlaneseq
    %v88 = vshrl.u32 %v87, 7
    %v89 = vsub.s32 0, %v88
    %v90 = vrot.slane %v85, %v89
    %v91 = vlaneseq
    %v92 = vshrl.u32 %v91, 7
    %v93 = vsub.s32 1, %v92
    %v94 = vrot.slane %v85, %v93
    %v101 = vunpack.c.l.b16 %v81
    %v102 = vunpack.c.h.b16 %v81
    %v103 = vunpack.c.l.b16 %v82
    %v104 = vunpack.c.h.b16 %v82
    %v105 = vunpack.c.l.b16 %v83
    %v106 = vunpack.c.h.b16 %v83
    %v107 = vunpack.c.l.b16 %v84
    %v108 = vunpack.c.h.b16 %v84
    %v109 = vpack.c.b16 %v103, %v101
    %v110 = vpack.c.b16 %v104, %v102
    %v111 = vpack.c.b16 %v107, %v105
    %v112 = vpack.c.b16 %v108, %v106
    %vm117 = vcmask 261120
    %v119 = vsel %vm117, %v80, 0
    %121 = vmatprep.subr.bf16.mxu0 %v110
    %122 = vmatpush1.bf16.msra.mxu0 %v109
    %123 = vmatprep.subr.bf16.mxu0 %v112
    %124 = vmatpush1.bf16.msra.mxu0 %v111
    %125 = vmatprep.subr.bf16.mxu0 0
    %126 = vmatpush1.bf16.msra.mxu0 0
    %127 = vmatprep.subr.bf16.mxu0 0
    %128 = vmatpush1.bf16.msra.mxu0 0
    %129 = vmatprep.subr.bf16.mxu0 0
    %130 = vmatpush1.bf16.msra.mxu0 0
    %131 = vmatprep.subr.bf16.mxu0 0
    %132 = vmatpush1.bf16.msra.mxu0 0
    %133 = vmatprep.subr.bf16.mxu0 0
    %134 = vmatpush1.bf16.msra.mxu0 0
    %135 = vmatprep.subr.bf16.mxu0 0
    %136 = vmatpush1.bf16.msra.mxu0 0
    %137 = vmatprep.subr.bf16.mxu0 0
    %138 = vmatpush1.bf16.msra.mxu0 0
    %139 = vmatprep.subr.bf16.mxu0 0
    %140 = vmatpush1.bf16.msra.mxu0 0
    %141 = vmatprep.subr.bf16.mxu0 0
    %142 = vmatpush1.bf16.msra.mxu0 0
    %143 = vmatprep.subr.bf16.mxu0 0
    %144 = vmatpush1.bf16.msra.mxu0 0
    %145 = vmatprep.subr.bf16.mxu0 0
    %146 = vmatpush1.bf16.msra.mxu0 0
    %147 = vmatprep.subr.bf16.mxu0 0
    %148 = vmatpush1.bf16.msra.mxu0 0
    %149 = vmatprep.subr.bf16.mxu0 0
    %150 = vmatpush1.bf16.msra.mxu0 0
    %151 = vmatprep.subr.bf16.mxu0 0
    %152 = vmatpush1.bf16.msra.mxu0 0
    %153 = vmatprep.mubr.bf16.mxu0 0
    %154 = vmatmul.mubr.bf16.gmra.mrb[0].mxu0 %v119
    %v155 = vpop.f32.mrb[0].mxu0
    %v156 = vadd.f32 %v90, %v155
    %v157 = vpop.f32.mrb[0].mxu0
    %v158 = vadd.f32 %v94, %v157
    %v159 = vpop.f32.mrb[0].mxu0
    %v160 = vadd.f32 %v90, %v159
    %v161 = vpop.f32.mrb[0].mxu0
    %v162 = vadd.f32 %v94, %v161
    %163 = vdwg.mxu0
    %v164 = vmax.f32 %v156, 0.0
    %v165 = vmax.f32 %v158, 0.0
    %v166 = vmax.f32 %v160, 0.0
    %v167 = vmax.f32 %v162, 0.0
    %v168 = vpack.c.bf16 %v166, %v164
    %v169 = vpack.c.bf16 %v167, %v165
    %v170 = vld [vmem:[#allocation7] sm:$0xf]
    %v171 = vld [vmem:[#allocation7 + $0x4] sm:$0xf]
    %v172 = vld [vmem:[#allocation7 + $0x8] sm:$0xf]
    %v173 = vld [vmem:[#allocation7 + $0xc] sm:$0xf]
    %v174 = vld [vmem:[#allocation7 + $0x10] sm:$0xf]
    %v175 = vld [vmem:[#allocation7 + $0x14] sm:$0xf]
    %v176 = vld [vmem:[#allocation7 + $0x18] sm:$0xf]
    %v177 = vld [vmem:[#allocation7 + $0x1c] sm:$0xf]
    %v178 = vld [vmem:[#allocation7 + $0x20] sm:$0xf]
    %v179 = vld [vmem:[#allocation7 + $0x24] sm:$0xf]
    %v180 = vld [vmem:[#allocation7 + $0x28] sm:$0xf]
    %v181 = vld [vmem:[#allocation7 + $0x2c] sm:$0xf]
    %v182 = vld [vmem:[#allocation7 + $0x30] sm:$0xf]
    %v183 = vld [vmem:[#allocation7 + $0x34] sm:$0xf]
    %v184 = vld [vmem:[#allocation7 + $0x38] sm:$0xf]
    %v185 = vld [vmem:[#allocation7 + $0x3c] sm:$0xf]
    %v186 = vld [vmem:[#allocation7 + $0x40] sm:$0xf]
    %v187 = vld [vmem:[#allocation7 + $0x44] sm:$0xf]
    %v188 = vld [vmem:[#allocation7 + $0x48] sm:$0xf]
    %v189 = vld [vmem:[#allocation7 + $0x4c] sm:$0xf]
    %v190 = vld [vmem:[#allocation7 + $0x50] sm:$0xf]
    %v191 = vld [vmem:[#allocation7 + $0x54] sm:$0xf]
    %v192 = vld [vmem:[#allocation7 + $0x58] sm:$0xf]
    %v193 = vld [vmem:[#allocation7 + $0x5c] sm:$0xf]
    %v194 = vld [vmem:[#allocation7 + $0x60] sm:$0xf]
    %v195 = vld [vmem:[#allocation7 + $0x64] sm:$0xf]
    %v196 = vld [vmem:[#allocation7 + $0x68] sm:$0xf]
    %v197 = vld [vmem:[#allocation7 + $0x6c] sm:$0xf]
    %v198 = vld [vmem:[#allocation7 + $0x70] sm:$0xf]
    %v199 = vld [vmem:[#allocation7 + $0x74] sm:$0xf]
    %v200 = vld [vmem:[#allocation7 + $0x78] sm:$0xf]
    %v201 = vld [vmem:[#allocation7 + $0x7c] sm:$0xf]
    %v202 = vld [vmem:[#allocation8] sm:$0x1]
    %v204 = vlaneseq
    %v205 = vshrl.u32 %v204, 7
    %v206 = vsub.s32 0, %v205
    %v207 = vrot.slane %v202, %v206
    %v241 = vunpack.c.l.b16 %v170
    %v242 = vunpack.c.l.b16 %v171
    %v243 = vunpack.c.l.b16 %v172
    %v244 = vunpack.c.l.b16 %v173
    %v245 = vunpack.c.l.b16 %v174
    %v246 = vunpack.c.l.b16 %v175
    %v247 = vunpack.c.l.b16 %v176
    %v248 = vunpack.c.l.b16 %v177
    %v249 = vunpack.c.l.b16 %v178
    %v250 = vunpack.c.l.b16 %v179
    %v251 = vunpack.c.l.b16 %v180
    %v252 = vunpack.c.l.b16 %v181
    %v253 = vunpack.c.l.b16 %v182
    %v254 = vunpack.c.l.b16 %v183
    %v255 = vunpack.c.l.b16 %v184
    %v256 = vunpack.c.l.b16 %v185
    %v257 = vunpack.c.l.b16 %v186
    %v258 = vunpack.c.l.b16 %v187
    %v259 = vunpack.c.l.b16 %v188
    %v260 = vunpack.c.l.b16 %v189
    %v261 = vunpack.c.l.b16 %v190
    %v262 = vunpack.c.l.b16 %v191
    %v263 = vunpack.c.l.b16 %v192
    %v264 = vunpack.c.l.b16 %v193
    %v265 = vunpack.c.l.b16 %v194
    %v266 = vunpack.c.l.b16 %v195
    %v267 = vunpack.c.l.b16 %v196
    %v268 = vunpack.c.l.b16 %v197
    %v269 = vunpack.c.l.b16 %v198
    %v270 = vunpack.c.l.b16 %v199
    %v271 = vunpack.c.l.b16 %v200
    %v272 = vunpack.c.l.b16 %v201
    %v273 = vpack.c.b16 %v242, %v241
    %v274 = vpack.c.b16 %v244, %v243
    %v275 = vpack.c.b16 %v246, %v245
    %v276 = vpack.c.b16 %v248, %v247
    %v277 = vpack.c.b16 %v250, %v249
    %v278 = vpack.c.b16 %v252, %v251
    %v279 = vpack.c.b16 %v254, %v253
    %v280 = vpack.c.b16 %v256, %v255
    %v281 = vpack.c.b16 %v258, %v257
    %v282 = vpack.c.b16 %v260, %v259
    %v283 = vpack.c.b16 %v262, %v261
    %v284 = vpack.c.b16 %v264, %v263
    %v285 = vpack.c.b16 %v266, %v265
    %v286 = vpack.c.b16 %v268, %v267
    %v287 = vpack.c.b16 %v270, %v269
    %v288 = vpack.c.b16 %v272, %v271
    %305 = vmatprep.subr.bf16.mxu0 0
    %306 = vmatpush1.bf16.msra.mxu0 %v273
    %307 = vmatprep.subr.bf16.mxu0 0
    %308 = vmatpush1.bf16.msra.mxu0 %v274
    %309 = vmatprep.subr.bf16.mxu0 0
    %310 = vmatpush1.bf16.msra.mxu0 %v275
    %311 = vmatprep.subr.bf16.mxu0 0
    %312 = vmatpush1.bf16.msra.mxu0 %v276
    %313 = vmatprep.subr.bf16.mxu0 0
    %314 = vmatpush1.bf16.msra.mxu0 %v277
    %315 = vmatprep.subr.bf16.mxu0 0
    %316 = vmatpush1.bf16.msra.mxu0 %v278
    %317 = vmatprep.subr.bf16.mxu0 0
    %318 = vmatpush1.bf16.msra.mxu0 %v279
    %319 = vmatprep.subr.bf16.mxu0 0
    %320 = vmatpush1.bf16.msra.mxu0 %v280
    %321 = vmatprep.subr.bf16.mxu0 0
    %322 = vmatpush1.bf16.msra.mxu0 %v281
    %323 = vmatprep.subr.bf16.mxu0 0
    %324 = vmatpush1.bf16.msra.mxu0 %v282
    %325 = vmatprep.subr.bf16.mxu0 0
    %326 = vmatpush1.bf16.msra.mxu0 %v283
    %327 = vmatprep.subr.bf16.mxu0 0
    %328 = vmatpush1.bf16.msra.mxu0 %v284
    %329 = vmatprep.subr.bf16.mxu0 0
    %330 = vmatpush1.bf16.msra.mxu0 %v285
    %331 = vmatprep.subr.bf16.mxu0 0
    %332 = vmatpush1.bf16.msra.mxu0 %v286
    %333 = vmatprep.subr.bf16.mxu0 0
    %334 = vmatpush1.bf16.msra.mxu0 %v287
    %335 = vmatprep.subr.bf16.mxu0 0
    %336 = vmatpush1.bf16.msra.mxu0 %v288
    %337 = vmatprep.mubr.bf16.mxu0 %v169
    %338 = vmatmul.mubr.bf16.gmra.mrb[0].mxu0 %v168
    %v339 = vpop.f32.mrb[0].mxu0
    %v340 = vadd.f32 %v207, %v339
    %v341 = vpop.f32.mrb[0].mxu0
    %v342 = vpop.f32.mrb[0].mxu0
    %v343 = vadd.f32 %v207, %v342
    %v344 = vpop.f32.mrb[0].mxu0
    %345 = vdwg.mxu0
    %v346 = vmax.f32 %v340, 0.0
    %v347 = vmax.f32 %v343, 0.0
    %v348 = vld [vmem:[%s5] sm:$0xff]
    %v349 = vld [vmem:[%s5 + $0x8] sm:$0xff]
    %v350 = vmul.f32 %v346, %v348
    %v351 = vmul.f32 %v347, %v349
    %352 = vst [vmem:[#allocation10] sm:$0xff] %v350
    %353 = vst [vmem:[#allocation10 + $0x8] sm:$0xff] %v351
    // Predicated region
    $region42: #{tpu_custom_call.1} parent=1 // pred_check
      _
    $region43: #{tpu_custom_call.1} parent=1 // pred_check_branch
      %355 = sbr.rel (0) target = $region45
    $region44: #{tpu_custom_call.1} parent=1 // pred_region
      %s357 = ssub.s32 256, 256
      %358 = vsyncadd [#allocation4], %s357
      %s359 = sshll.u32 [#allocation10], 4
      %s360 = int_to_ptr.vmem [resolvable:$true] %s359
      %365 = dma.vmem_to_hbm [thread:$0]  %s360, 256, %s6, [#allocation4], 128, 128, 8
    $region45: #{tpu_custom_call.1} parent=1 // pred_fallthru
      _
    // Predicated region
    $region46: #{tpu_custom_call.1} parent=1 // pred_check
      _
    $region47: #{tpu_custom_call.1} parent=1 // pred_check_branch
      %367 = sbr.rel (0) target = $region49
    $region48: #{tpu_custom_call.1} parent=1 // pred_region
      %368 = dma.done [#allocation4], 256
    $region49: #{tpu_custom_call.1} parent=1 // pred_fallthru
      _
    %369 = vsyncpa [#allocation3], 1
    %370 = vsyncpa [#allocation6], 1
    %371 = vsyncpa [#allocation9], 1
    %372 = vsyncpa [#allocation4], 1

</llo_original>
